<compile_context>
chip_gen: v7x
topology: tpu7x:2x2x1
jax: 0.10.0
libtpu: 0.0.40
codegen_flags: <defaults>
</compile_context>

<pallas_src>
import jax
import jax.numpy as jnp
import numpy as np
from jax.experimental import pallas as pl
from jax.experimental.pallas import tpu as pltpu


def _round_up(v, m):
    return -(-v // m) * m


def mrconv_kernel(x_ref, d_ref, w_ref, b_ref, o_ref):
    # x_ref : (1, C, tn)         node features (channel-first, tn lane-dense)
    # d_ref : (1, C, K, tn)      gathered (x_j - x_i), K on a non-minor axis
    # w_ref : (Coutp, 2C)        conv weight, columns ordered [x-chans | r-chans]
    # b_ref : (Coutp, 1)         bias (f32)
    # o_ref : (1, Coutp, tn)     lane-dense output
    C = x_ref.shape[1]
    K = d_ref.shape[2]

    x_tile = x_ref[0]                                   # (C, tn)

    # Running max over K neighbors: K-1 elementwise (VPU) maxes, only ~2
    # (C, tn) slabs live at a time (no vreg blow-up, no cross-lane reduce).
    relmax = d_ref[0, :, 0, :]                          # (C, tn)
    for k in range(1, K):
        relmax = jnp.maximum(relmax, d_ref[0, :, k, :])

    if 2 * C <= 128:
        # One 2C-deep MXU pass instead of two C-deep ones.
        feat = jnp.concatenate([x_tile, relmax], axis=0)            # (2C, tn)
        acc = jnp.dot(w_ref[...], feat, preferred_element_type=jnp.float32)
    else:
        acc = (jnp.dot(w_ref[:, :C], x_tile, preferred_element_type=jnp.float32)
               + jnp.dot(w_ref[:, C:], relmax, preferred_element_type=jnp.float32))
    acc = acc + b_ref[...]                                          # (Coutp, tn) f32
    o_ref[0] = jnp.maximum(acc, 0.0).astype(o_ref.dtype)


def _pick_tile_n(Np, C, K, Coutp, itemsize, budget=24 * 1024 * 1024):
    """Largest 128-multiple tile along N (dividing Np) whose double-buffered,
    layout-padded working set fits `budget` bytes of VMEM.
    Np must already be a multiple of 128."""
    assert Np % 128 == 0, Np
    best = 128
    for tn in range(128, Np + 1, 128):
        if Np % tn != 0:
            continue
        diff_b = C * _round_up(K, 8) * tn * itemsize        # (1, C, K, tn) block
        x_b = _round_up(C, 8) * tn * itemsize               # (1, C, tn) block
        out_b = _round_up(Coutp, 8) * tn * itemsize         # (1, Coutp, tn) block
        wset = 2 * (diff_b + x_b + out_b)                   # 2x: double buffering
        if wset <= budget:
            best = tn
    return best


def mrconv2d(x, edge_index, weight, bias, *, tile_n=None):
    """x: (B, C, N, 1); edge_index: (2, B, N, K) int32;
    weight: (Cout, 2C, 1, 1); bias: (Cout,).  Returns (B, Cout, N, 1)."""
    B, C, N, _ = x.shape
    K = edge_index.shape[-1]
    Cout = weight.shape[0]
    dt = x.dtype
    itemsize = jnp.dtype(dt).itemsize

    # Lane/sublane-friendly padding (sliced back after the kernel).
    Np = _round_up(N, 128)
    Coutp = _round_up(Cout, 8)

    tn = tile_n if tile_n is not None else _pick_tile_n(Np, C, K, Coutp, itemsize)
    assert Np % tn == 0 and tn % 128 == 0, (Np, tn)

    # --- batched_index_select glue (plain JAX) --------------------------------
    # Gather + subtract fuse into one XLA pass; the single K-wide tensor is
    # materialized directly in (B, C, K, N) layout so K is OFF the minor axis.
    x_sq = x[:, :, :, 0]                                   # (B, C, N)
    bidx = jnp.arange(B)[:, None, None, None]
    cidx = jnp.arange(C)[None, :, None, None]
    nbr = jnp.transpose(edge_index[0], (0, 2, 1))          # (B, K, N)
    ctr = jnp.transpose(edge_index[1], (0, 2, 1))          # (B, K, N)
    diff = (x_sq[bidx, cidx, nbr[:, None, :, :]]
            - x_sq[bidx, cidx, ctr[:, None, :, :]])        # (B, C, K, N)

    if Np != N:
        x_sq = jnp.pad(x_sq, ((0, 0), (0, 0), (0, Np - N)))
        diff = jnp.pad(diff, ((0, 0), (0, 0), (0, 0), (0, Np - N)))

    # Conv2d(2C, Cout, 1): input channels are interleaved [x_0, r_0, x_1, r_1, ...].
    # Reorder columns to the blocked [x-channels | r-channels] layout used in-kernel.
    w2d = weight[:, :, 0, 0]                               # (Cout, 2C)
    w_cat = jnp.concatenate([w2d[:, 0::2], w2d[:, 1::2]], axis=1)   # (Cout, 2C)
    if Coutp != Cout:
        w_cat = jnp.pad(w_cat, ((0, Coutp - Cout), (0, 0)))
        bias_p = jnp.pad(bias, (0, Coutp - Cout))
    else:
        bias_p = bias
    w_cat = w_cat.astype(dt)
    b2 = bias_p.reshape(Coutp, 1).astype(jnp.float32)

    out = pl.pallas_call(
        mrconv_kernel,
        out_shape=jax.ShapeDtypeStruct((B, Coutp, Np), dt),
        grid=(B, Np // tn),
        in_specs=[
            pl.BlockSpec((1, C, tn), lambda b, n: (b, 0, n)),
            pl.BlockSpec((1, C, K, tn), lambda b, n: (b, 0, 0, n)),
            pl.BlockSpec((Coutp, 2 * C), lambda b, n: (0, 0)),
            pl.BlockSpec((Coutp, 1), lambda b, n: (0, 0)),
        ],
        out_specs=pl.BlockSpec((1, Coutp, tn), lambda b, n: (b, 0, n)),
        compiler_params=pltpu.CompilerParams(
            dimension_semantics=("parallel", "parallel"),
            vmem_limit_bytes=32 * 1024 * 1024),
    )(x_sq, diff, w_cat, b2)                               # (B, Coutp, Np)

    return out[:, :Cout, :N, None]                         # (B, Cout, N, 1)


def _reference(x, edge_index, weight, bias):
    """Pure-JAX reference mirroring the PyTorch MRConv2d forward."""
    B, C, N, _ = x.shape
    x_sq = x[:, :, :, 0]
    bidx = jnp.arange(B)[:, None, None, None]
    cidx = jnp.arange(C)[None, :, None, None]
    x_i = x_sq[bidx, cidx, edge_index[1][:, None, :, :]]      # (B, C, N, K)
    x_j = x_sq[bidx, cidx, edge_index[0][:, None, :, :]]
    rel = jnp.max(x_j - x_i, axis=-1, keepdims=True)          # (B, C, N, 1)
    feat = jnp.concatenate([x[:, :, None, :, :], rel[:, :, None, :, :]], axis=2)
    feat = feat.reshape(B, 2 * C, N, 1)                       # interleaved channels
    w2d = weight[:, :, 0, 0]
    conv = jnp.einsum('om,bmnk->bonk', w2d, feat) + bias[None, :, None, None]
    return jnp.maximum(conv, 0.0)                             # (B, Cout, N, 1)


if __name__ == "__main__":
    key = jax.random.PRNGKey(0)
    k_x, k_idx, k_w, k_b = jax.random.split(key, 4)

    B, C, N, K, Cout = 2, 4, 16, 8, 8

    x = jax.random.normal(k_x, (B, C, N, 1), dtype=jnp.float32)
    # edge_index[1] = center node index, edge_index[0] = random neighbor indices
    centers = jnp.broadcast_to(jnp.arange(N, dtype=jnp.int32)[None, :, None], (B, N, K))
    neighbors = jax.random.randint(k_idx, (B, N, K), 0, N, dtype=jnp.int32)
    edge_index = jnp.stack([neighbors, centers], axis=0)       # (2, B, N, K)

    # Conv2d(2C, Cout, kernel_size=1, bias=True) parameters
    weight = 0.1 * jax.random.normal(k_w, (Cout, 2 * C, 1, 1), dtype=jnp.float32)
    bias = 0.1 * jax.random.normal(k_b, (Cout,), dtype=jnp.float32)

    out = mrconv2d(x, edge_index, weight, bias)
    out = jax.block_until_ready(out)

    ref = _reference(x, edge_index, weight, bias)
    np.testing.assert_allclose(np.asarray(out), np.asarray(ref), rtol=1e-5, atol=1e-5)

    print("KERNEL_OK")
</pallas_src>

<mosaic_0001>
module attributes {stable_mosaic.version = 11 : i64} {
  func.func @mrconv_kernel(%arg0: i32, %arg1: i32, %arg2: memref<1x4x128xf32, #tpu.memory_space<vmem>>, %arg3: memref<1x4x8x128xf32, #tpu.memory_space<vmem>>, %arg4: memref<8x8xf32, #tpu.memory_space<vmem>>, %arg5: memref<8x1xf32, #tpu.memory_space<vmem>>, %arg6: memref<1x8x128xf32, #tpu.memory_space<vmem>>) attributes {dimension_semantics = [#tpu.dimension_semantics<parallel>, #tpu.dimension_semantics<parallel>], iteration_bounds = array<i64: 2, 1>, scalar_prefetch = 0 : i64, scratch_operands = 0 : i64, tpu.core_type = #tpu.core_type<tc>, window_params = [{transform_indices = @transform_0, window_bounds = array<i64: 1, 4, 128>}, {transform_indices = @transform_1, window_bounds = array<i64: 1, 4, 8, 128>}, {pipeline_mode = #tpu.pipeline_mode<synchronous>, transform_indices = @transform_2, window_bounds = array<i64: 8, 8>}, {pipeline_mode = #tpu.pipeline_mode<synchronous>, transform_indices = @transform_3, window_bounds = array<i64: 8, 1>}, {transform_indices = @transform_4, window_bounds = array<i64: 1, 8, 128>}]} {
    %c0 = arith.constant 0 : index
    %c0_0 = arith.constant 0 : index
    %c0_1 = arith.constant 0 : index
    %0 = vector.load %arg2[%c0, %c0_0, %c0_1] : memref<1x4x128xf32, #tpu.memory_space<vmem>>, vector<1x4x128xf32>
    %1 = vector.shape_cast %0 : vector<1x4x128xf32> to vector<4x128xf32>
    %c0_2 = arith.constant 0 : index
    %c0_3 = arith.constant 0 : index
    %c0_4 = arith.constant 0 : index
    %c0_5 = arith.constant 0 : index
    %2 = vector.load %arg3[%c0_2, %c0_3, %c0_4, %c0_5] : memref<1x4x8x128xf32, #tpu.memory_space<vmem>>, vector<1x4x1x128xf32>
    %3 = vector.shape_cast %2 : vector<1x4x1x128xf32> to vector<4x128xf32>
    %c0_6 = arith.constant 0 : index
    %c0_7 = arith.constant 0 : index
    %c1 = arith.constant 1 : index
    %c0_8 = arith.constant 0 : index
    %4 = vector.load %arg3[%c0_6, %c0_7, %c1, %c0_8] : memref<1x4x8x128xf32, #tpu.memory_space<vmem>>, vector<1x4x1x128xf32>
    %5 = vector.shape_cast %4 : vector<1x4x1x128xf32> to vector<4x128xf32>
    %6 = arith.maximumf %3, %5 : vector<4x128xf32>
    %c0_9 = arith.constant 0 : index
    %c0_10 = arith.constant 0 : index
    %c2 = arith.constant 2 : index
    %c0_11 = arith.constant 0 : index
    %7 = vector.load %arg3[%c0_9, %c0_10, %c2, %c0_11] : memref<1x4x8x128xf32, #tpu.memory_space<vmem>>, vector<1x4x1x128xf32>
    %8 = vector.shape_cast %7 : vector<1x4x1x128xf32> to vector<4x128xf32>
    %9 = arith.maximumf %6, %8 : vector<4x128xf32>
    %c0_12 = arith.constant 0 : index
    %c0_13 = arith.constant 0 : index
    %c3 = arith.constant 3 : index
    %c0_14 = arith.constant 0 : index
    %10 = vector.load %arg3[%c0_12, %c0_13, %c3, %c0_14] : memref<1x4x8x128xf32, #tpu.memory_space<vmem>>, vector<1x4x1x128xf32>
    %11 = vector.shape_cast %10 : vector<1x4x1x128xf32> to vector<4x128xf32>
    %12 = arith.maximumf %9, %11 : vector<4x128xf32>
    %c0_15 = arith.constant 0 : index
    %c0_16 = arith.constant 0 : index
    %c4 = arith.constant 4 : index
    %c0_17 = arith.constant 0 : index
    %13 = vector.load %arg3[%c0_15, %c0_16, %c4, %c0_17] : memref<1x4x8x128xf32, #tpu.memory_space<vmem>>, vector<1x4x1x128xf32>
    %14 = vector.shape_cast %13 : vector<1x4x1x128xf32> to vector<4x128xf32>
    %15 = arith.maximumf %12, %14 : vector<4x128xf32>
    %c0_18 = arith.constant 0 : index
    %c0_19 = arith.constant 0 : index
    %c5 = arith.constant 5 : index
    %c0_20 = arith.constant 0 : index
    %16 = vector.load %arg3[%c0_18, %c0_19, %c5, %c0_20] : memref<1x4x8x128xf32, #tpu.memory_space<vmem>>, vector<1x4x1x128xf32>
    %17 = vector.shape_cast %16 : vector<1x4x1x128xf32> to vector<4x128xf32>
    %18 = arith.maximumf %15, %17 : vector<4x128xf32>
    %c0_21 = arith.constant 0 : index
    %c0_22 = arith.constant 0 : index
    %c6 = arith.constant 6 : index
    %c0_23 = arith.constant 0 : index
    %19 = vector.load %arg3[%c0_21, %c0_22, %c6, %c0_23] : memref<1x4x8x128xf32, #tpu.memory_space<vmem>>, vector<1x4x1x128xf32>
    %20 = vector.shape_cast %19 : vector<1x4x1x128xf32> to vector<4x128xf32>
    %21 = arith.maximumf %18, %20 : vector<4x128xf32>
    %c0_24 = arith.constant 0 : index
    %c0_25 = arith.constant 0 : index
    %c7 = arith.constant 7 : index
    %c0_26 = arith.constant 0 : index
    %22 = vector.load %arg3[%c0_24, %c0_25, %c7, %c0_26] : memref<1x4x8x128xf32, #tpu.memory_space<vmem>>, vector<1x4x1x128xf32>
    %23 = vector.shape_cast %22 : vector<1x4x1x128xf32> to vector<4x128xf32>
    %24 = arith.maximumf %21, %23 : vector<4x128xf32>
    %25 = tpu.concatenate %1, %24 in 0 : vector<4x128xf32>, vector<4x128xf32> -> vector<8x128xf32>
    %c0_27 = arith.constant 0 : index
    %c0_28 = arith.constant 0 : index
    %26 = vector.load %arg4[%c0_27, %c0_28] : memref<8x8xf32, #tpu.memory_space<vmem>>, vector<8x8xf32>
    %cst = arith.constant dense<0.000000e+00> : vector<8x128xf32>
    %27 = tpu.matmul %26, %25, %cst {dimension_numbers = #tpu.dot_dimension_numbers<[1], [0], [0], [1], [0, 0, 1, 1], [], []>} : vector<8x8xf32>, vector<8x128xf32>, vector<8x128xf32> -> vector<8x128xf32>
    %c0_29 = arith.constant 0 : index
    %c0_30 = arith.constant 0 : index
    %28 = vector.load %arg5[%c0_29, %c0_30] : memref<8x1xf32, #tpu.memory_space<vmem>>, vector<8x1xf32>
    %29 = vector.broadcast %28 : vector<8x1xf32> to vector<8x128xf32>
    %30 = arith.addf %27, %29 : vector<8x128xf32>
    %cst_31 = arith.constant 0.000000e+00 : f32
    %31 = vector.broadcast %cst_31 : f32 to vector<8x128xf32>
    %32 = arith.maximumf %30, %31 : vector<8x128xf32>
    %c0_32 = arith.constant 0 : index
    %c0_33 = arith.constant 0 : index
    %c0_34 = arith.constant 0 : index
    %33 = vector.load %arg6[%c0_32, %c0_33, %c0_34] : memref<1x8x128xf32, #tpu.memory_space<vmem>>, vector<1x8x128xf32>
    %34 = vector.shape_cast %33 : vector<1x8x128xf32> to vector<8x128xf32>
    %35 = vector.shape_cast %32 : vector<8x128xf32> to vector<1x8x128xf32>
    tpu.vector_store %arg6[%c0_32, %c0_33, %c0_34], %35 {strides = array<i32>} : memref<1x8x128xf32, #tpu.memory_space<vmem>>, vector<1x8x128xf32>,
    return
  }
  func.func @transform_0(%arg0: i32, %arg1: i32) -> (i32, i32, i32) {
    %c0_i32 = arith.constant 0 : i32
    %c0_i32_0 = arith.constant 0 : i32
    return %arg0, %c0_i32, %arg1 : i32, i32, i32
  }
  func.func @transform_1(%arg0: i32, %arg1: i32) -> (i32, i32, i32, i32) {
    %c0_i32 = arith.constant 0 : i32
    %c0_i32_0 = arith.constant 0 : i32
    %c0_i32_1 = arith.constant 0 : i32
    return %arg0, %c0_i32, %c0_i32_0, %arg1 : i32, i32, i32, i32
  }
  func.func @transform_2(%arg0: i32, %arg1: i32) -> (i32, i32) {
    %c0_i32 = arith.constant 0 : i32
    %c0_i32_0 = arith.constant 0 : i32
    %c0_i32_1 = arith.constant 0 : i32
    return %c0_i32, %c0_i32_0 : i32, i32
  }
  func.func @transform_3(%arg0: i32, %arg1: i32) -> (i32, i32) {
    %c0_i32 = arith.constant 0 : i32
    %c0_i32_0 = arith.constant 0 : i32
    %c0_i32_1 = arith.constant 0 : i32
    return %c0_i32, %c0_i32_0 : i32, i32
  }
  func.func @transform_4(%arg0: i32, %arg1: i32) -> (i32, i32, i32) {
    %c0_i32 = arith.constant 0 : i32
    %c0_i32_0 = arith.constant 0 : i32
    return %arg0, %c0_i32, %arg1 : i32, i32, i32
  }
}

</mosaic_0001>

<llo_original>
// kernel: tpu_custom_call.1
$region0: #{tpu_custom_call.1}
  #allocation0 [shape = 'u32[]', space=smem, size = 0x4, offset = 0x4, fixed_abs, tag = 'smem constant byte address 0x4 - core index']
  #allocation1 [shape = 'u32[144,128]{1,0:T(1,128)}', space=vmem, size = 0x12000, scoped, tag = 'internal scratch']
  %s0 = inlined_call_operand.vmem [shape: f32[2,4,128], index: 0, kind: input, shape index: {}]
  %s1 = inlined_call_operand.hbm [shape: f32[2,4,8,128], index: 1, kind: input, shape index: {}]
  %s2 = inlined_call_operand.vmem [shape: f32[8,8], index: 2, kind: input, shape index: {}]
  %s3 = inlined_call_operand.vmem [shape: f32[8,1], index: 3, kind: input, shape index: {}]
  %s4 = inlined_call_operand.hbm [shape: f32[2,8,128], index: 4, kind: output, shape index: {}]
  %s5 = sld [smem:[#allocation0]]
  $region53: #{tpu_custom_call.1} parent=0
    _
  %s7 = ssub.s32 1, %s5
  %s8 = scalar_select 0, %s7, %s5
  $region1: #{tpu_custom_call.1} parent=0
    #allocation2 [shape = 'u8[32768]{0}', space=vmem, size = 0x8000, scoped, tag = 'input window, operand 1']
    #allocation3 [shape = 's32[2]{0}', space=sflag, size = 0x8, scoped, tag = 'scoped memory for tpu_custom_call.1']
    #allocation4 [shape = 's32[2]{0}', space=sflag, size = 0x8, scoped, tag = 'scoped memory for tpu_custom_call.1']
    #allocation5 [shape = 'u8[8192]{0}', space=vmem, size = 0x2000, scoped, tag = 'output window, operand 0']
    %9 = vsyncpa [#allocation3], 0
    %s10 = scalar_lea.sflag [#allocation3], 1
    %11 = vsyncpa %s10, 0
    %12 = vsyncpa [#allocation4], 0
    %s13 = scalar_lea.sflag [#allocation4], 1
    %14 = vsyncpa %s13, 0
    loop: start=0, step=1, limit=4
    $region2: #{tpu_custom_call.1} parent=1 // loop_pre_header
      _
    $region3: #{tpu_custom_call.1} parent=1 // loop_header
      %s16 = sphi 0, %s20
      %p17 = scmp.ge.s32.totalorder %s16, 4
      %s23 = sphi 0, %s35
      %s24 = sphi 0, %s31
      %s25 = sphi 0, %s23
      %s26 = sphi 0, %s24
      %s27 = sphi 0, %s25
      %s28 = sphi 0, %s26
      %s40 = sphi 0, %s42
      %s43 = sphi 0, %s40
      %s44 = sphi 0, %s43
      %s60 = sphi 0, %s44
      %s68 = sphi 0, %s70
      %s71 = sphi 0, %s68
      %s72 = sphi 0, %s71
      %s88 = sphi 0, %s72
      %s92 = sphi 0, %s92
      %s94 = sphi 0, %s92
      %s95 = sphi 0, %s94
      %s109 = sphi 0, %s95
      %s113 = sphi 0, %s113
      %s115 = sphi 0, %s113
      %s116 = sphi 0, %s115
      %s130 = sphi 0, %s116
      %s138 = sphi 0, %s140
      %s141 = sphi 0, %s138
      %s142 = sphi 0, %s141
      %s158 = sphi 0, %s142
    $region4: #{tpu_custom_call.1} parent=1 // loop_header_branch
      %19 = sbr.rel (%p17) target = $region8
    $region5: #{tpu_custom_call.1} parent=1 // loop_body
      %s21 = ssub.s32 %s16, 1
      %s22 = ssub.s32 %s16, 2
      %s29 = sadd.s32 1, %s24
      %p30 = scmp.ge.s32.totalorder %s29, 1
      %s31 = scalar_select %p30, 0, %s29
      %s32 = sadd.s32 1, %s23
      %s33 = scalar_select %p30, %s32, %s23
      %p34 = scmp.ge.s32.totalorder %s33, 2
      %s35 = scalar_select %p34, 0, %s33
      %s36 = ssub.s32 %s23, %s35
      %s37 = ssub.s32 %s24, %s31
      %s38 = sor.u32 %s36, %s37
      %p39 = scmp.eq.s32.totalorder %s38, 0
      %s41 = sadd.s32 %s40, 1
      %s42 = scalar_select %p39, %s40, %s41
      %p45 = pneg %p39
      %p46 = scmp.eq.s32.totalorder %s16, 1
      %p47 = por %p45, %p46
      %p48 = scmp.ne.s32.totalorder %s40, %s43
      %p49 = scmp.eq.s32.totalorder %s16, 0
      %p50 = por %p48, %p49
      %p51 = scmp.ne.s32.totalorder %s40, %s43
      %p52 = scmp.eq.s32.totalorder %s21, 1
      %p53 = por %p51, %p52
      %p54 = scmp.ne.s32.totalorder %s43, %s44
      %p55 = scmp.eq.s32.totalorder %s21, 0
      %p56 = por %p54, %p55
      %p57 = scmp.ne.s32.totalorder %s43, %s44
      %p58 = scmp.eq.s32.totalorder %s22, 1
      %p59 = por %p57, %p58
      %p61 = scmp.ne.s32.totalorder %s44, %s60
      %p62 = scmp.eq.s32.totalorder %s22, 0
      %p63 = por %p61, %p62
      %s64 = ssub.s32 %s23, %s35
      %s65 = ssub.s32 %s24, %s31
      %s66 = sor.u32 %s64, %s65
      %p67 = scmp.eq.s32.totalorder %s66, 0
      %s69 = sadd.s32 %s68, 1
      %s70 = scalar_select %p67, %s68, %s69
      %p73 = pneg %p67
      %p74 = scmp.eq.s32.totalorder %s16, 1
      %p75 = por %p73, %p74
      %p76 = scmp.ne.s32.totalorder %s68, %s71
      %p77 = scmp.eq.s32.totalorder %s16, 0
      %p78 = por %p76, %p77
      %p79 = scmp.ne.s32.totalorder %s68, %s71
      %p80 = scmp.eq.s32.totalorder %s21, 1
      %p81 = por %p79, %p80
      %p82 = scmp.ne.s32.totalorder %s71, %s72
      %p83 = scmp.eq.s32.totalorder %s21, 0
      %p84 = por %p82, %p83
      %p85 = scmp.ne.s32.totalorder %s71, %s72
      %p86 = scmp.eq.s32.totalorder %s22, 1
      %p87 = por %p85, %p86
      %p89 = scmp.ne.s32.totalorder %s72, %s88
      %p90 = scmp.eq.s32.totalorder %s22, 0
      %p91 = por %p89, %p90
      %s93 = sadd.s32 %s92, 1
      %p96 = scmp.eq.s32.totalorder %s16, 1
      %p97 = scmp.ne.s32.totalorder %s92, %s94
      %p98 = scmp.eq.s32.totalorder %s16, 0
      %p99 = por %p97, %p98
      %p100 = scmp.ne.s32.totalorder %s92, %s94
      %p101 = scmp.eq.s32.totalorder %s21, 1
      %p102 = por %p100, %p101
      %p103 = scmp.ne.s32.totalorder %s94, %s95
      %p104 = scmp.eq.s32.totalorder %s21, 0
      %p105 = por %p103, %p104
      %p106 = scmp.ne.s32.totalorder %s94, %s95
      %p107 = scmp.eq.s32.totalorder %s22, 1
      %p108 = por %p106, %p107
      %p110 = scmp.ne.s32.totalorder %s95, %s109
      %p111 = scmp.eq.s32.totalorder %s22, 0
      %p112 = por %p110, %p111
      %s114 = sadd.s32 %s113, 1
      %p117 = scmp.eq.s32.totalorder %s16, 1
      %p118 = scmp.ne.s32.totalorder %s113, %s115
      %p119 = scmp.eq.s32.totalorder %s16, 0
      %p120 = por %p118, %p119
      %p121 = scmp.ne.s32.totalorder %s113, %s115
      %p122 = scmp.eq.s32.totalorder %s21, 1
      %p123 = por %p121, %p122
      %p124 = scmp.ne.s32.totalorder %s115, %s116
      %p125 = scmp.eq.s32.totalorder %s21, 0
      %p126 = por %p124, %p125
      %p127 = scmp.ne.s32.totalorder %s115, %s116
      %p128 = scmp.eq.s32.totalorder %s22, 1
      %p129 = por %p127, %p128
      %p131 = scmp.ne.s32.totalorder %s116, %s130
      %p132 = scmp.eq.s32.totalorder %s22, 0
      %p133 = por %p131, %p132
      %s134 = ssub.s32 %s23, %s35
      %s135 = ssub.s32 %s24, %s31
      %s136 = sor.u32 %s134, %s135
      %p137 = scmp.eq.s32.totalorder %s136, 0
      %s139 = sadd.s32 %s138, 1
      %s140 = scalar_select %p137, %s138, %s139
      %p143 = pneg %p137
      %p144 = scmp.eq.s32.totalorder %s16, 1
      %p145 = por %p143, %p144
      %p146 = scmp.ne.s32.totalorder %s138, %s141
      %p147 = scmp.eq.s32.totalorder %s16, 0
      %p148 = por %p146, %p147
      %p149 = scmp.ne.s32.totalorder %s138, %s141
      %p150 = scmp.eq.s32.totalorder %s21, 1
      %p151 = por %p149, %p150
      %p152 = scmp.ne.s32.totalorder %s141, %s142
      %p153 = scmp.eq.s32.totalorder %s21, 0
      %p154 = por %p152, %p153
      %p155 = scmp.ne.s32.totalorder %s141, %s142
      %p156 = scmp.eq.s32.totalorder %s22, 1
      %p157 = por %p155, %p156
      %p159 = scmp.ne.s32.totalorder %s142, %s158
      %p160 = scmp.eq.s32.totalorder %s22, 0
      %p161 = por %p159, %p160
      %p162 = scmp.le.s32.totalorder 1, %s16
      %p163 = scmp.lt.s32.totalorder %s16, 3
      %p164 = pnand %p162, %p163
      %p165 = pneg %p164
      // Predicated region
      $region9: #{tpu_custom_call.1} parent=5 // pred_check
        _
      $region10: #{tpu_custom_call.1} parent=5 // pred_check_branch
        %167 = sbr.rel (%p164) target = $region12
      $region11: #{tpu_custom_call.1} parent=5 // pred_region
        %s168 = ssub.s32 %s16, 1
        // Predicated region
        $region13: #{tpu_custom_call.1} parent=11 // pred_check
          %p169 = pneg %p105
        $region14: #{tpu_custom_call.1} parent=11 // pred_check_branch
          %171 = sbr.rel (%p169) target = $region16
        $region15: #{tpu_custom_call.1} parent=11 // pred_region
          _
        $region16: #{tpu_custom_call.1} parent=11 // pred_fallthru
          _
        // Predicated region
        $region17: #{tpu_custom_call.1} parent=11 // pred_check
          %p172 = pneg %p126
        $region18: #{tpu_custom_call.1} parent=11 // pred_check_branch
          %174 = sbr.rel (%p172) target = $region20
        $region19: #{tpu_custom_call.1} parent=11 // pred_region
          _
        $region20: #{tpu_custom_call.1} parent=11 // pred_fallthru
          _
      $region12: #{tpu_custom_call.1} parent=5 // pred_fallthru
        _
      %p175 = scmp.lt.s32.totalorder %s16, 2
      // Predicated region
      $region21: #{tpu_custom_call.1} parent=5 // pred_check
        %p176 = pneg %p175
      $region22: #{tpu_custom_call.1} parent=5 // pred_check_branch
        %178 = sbr.rel (%p176) target = $region24
      $region23: #{tpu_custom_call.1} parent=5 // pred_region
        // Predicated region
        $region25: #{tpu_custom_call.1} parent=23 // pred_check
          %p179 = pneg %p50
        $region26: #{tpu_custom_call.1} parent=23 // pred_check_branch
          %181 = sbr.rel (%p179) target = $region28
        $region27: #{tpu_custom_call.1} parent=23 // pred_region
          %p182 = scmp.lt.s32.totalorder %s23, 1
          %s183 = scalar_select %p182, %s23, 1
          %p184 = scmp.lt.s32.totalorder %s24, 0
          %s185 = scalar_select %p184, %s24, 0
          %s186 = sadd.s32 %s185, %s183
          %s187 = smul.addr %s186, 4
          %s188 = scalar_lea.vmem %s0, %s187
        $region28: #{tpu_custom_call.1} parent=23 // pred_fallthru
          _
        // Predicated region
        $region29: #{tpu_custom_call.1} parent=23 // pred_check
          %p189 = pneg %p78
        $region30: #{tpu_custom_call.1} parent=23 // pred_check_branch
          %191 = sbr.rel (%p189) target = $region32
        $region31: #{tpu_custom_call.1} parent=23 // pred_region
          %s192 = sand.u32 %s68, 1
          %s193 = scalar_lea.sflag [#allocation3], %s192
          %s194 = sand.u32 %s68, 1
          %s195 = smul.addr %s194, 32
          %s196 = scalar_lea.vmem [#allocation2], %s195
          %s198 = ssub.s32 512, 512
          %199 = vsyncadd %s193, %s198
          %s200 = smul.addr %s23, 4
          %s201 = sadd.s32 %s24, %s200
          %s202 = smul.addr %s201, 128
          %s203 = scalar_lea.hbm %s1, %s202
          %s204 = sshll.u32 %s196, 4
          %s205 = int_to_ptr.vmem [resolvable:$true] %s204
          %210 = dma.hbm_to_vmem [thread:$0]  %s203, 512, %s205, %s193, 128, 128, 8
        $region32: #{tpu_custom_call.1} parent=23 // pred_fallthru
          _
      $region24: #{tpu_custom_call.1} parent=5 // pred_fallthru
        _
      %p211 = scmp.le.s32.totalorder 1, %s16
      %p212 = scmp.lt.s32.totalorder %s16, 3
      %p213 = pnand %p211, %p212
      %p214 = pneg %p213
      // Predicated region
      $region33: #{tpu_custom_call.1} parent=5 // pred_check
        _
      $region34: #{tpu_custom_call.1} parent=5 // pred_check_branch
        %216 = sbr.rel (%p213) target = $region36
      $region35: #{tpu_custom_call.1} parent=5 // pred_region
        %s217 = ssub.s32 %s16, 1
        %s218 = sand.u32 %s71, 1
        %s219 = scalar_lea.sflag [#allocation3], %s218
        %s220 = sand.u32 %s71, 1
        %s221 = smul.addr %s220, 32
        %s222 = scalar_lea.vmem [#allocation2], %s221
        // Predicated region
        $region37: #{tpu_custom_call.1} parent=35 // pred_check
          %p223 = pneg %p84
        $region38: #{tpu_custom_call.1} parent=35 // pred_check_branch
          %225 = sbr.rel (%p223) target = $region40
        $region39: #{tpu_custom_call.1} parent=35 // pred_region
          %226 = dma.done %s219, 512
        $region40: #{tpu_custom_call.1} parent=35 // pred_fallthru
          _
        %p227 = scmp.lt.s32.totalorder %s25, 1
        %s228 = scalar_select %p227, %s25, 1
        %p229 = scmp.lt.s32.totalorder %s26, 0
        %s230 = scalar_select %p229, %s26, 0
        %s231 = sadd.s32 %s230, %s228
        %s232 = smul.addr %s231, 4
        %s233 = scalar_lea.vmem %s0, %s232
        %p234 = pneg %p56
        %p235 = pneg %p53
        %s236 = sand.u32 %s71, 1
        %s237 = scalar_lea.sflag [#allocation3], %s236
        %s238 = sand.u32 %s71, 1
        %s239 = smul.addr %s238, 32
        %s240 = scalar_lea.vmem [#allocation2], %s239
        %p241 = pneg %p84
        %p242 = pneg %p81
        %p243 = pneg %p105
        %p244 = pneg %p102
        %p245 = pneg %p126
        %p246 = pneg %p123
        %p247 = pneg %p154
        %p248 = pneg %p151
        %s249 = sand.u32 %s141, 1
        %s250 = scalar_lea.sflag [#allocation4], %s249
        %s251 = sand.u32 %s141, 1
        %s252 = smul.addr %s251, 8
        %s253 = scalar_lea.vmem [#allocation5], %s252
        %p254 = scmp.lt.s32.totalorder %s25, 1
        %s255 = scalar_select %p254, %s25, 1
        %p256 = scmp.lt.s32.totalorder %s26, 0
        %s257 = scalar_select %p256, %s26, 0
        %s258 = sadd.s32 %s257, %s255
        %s259 = smul.addr %s258, 4
        %s260 = scalar_lea.vmem %s0, %s259
        %v261 = vld [vmem:[%s260] sm:$0xf]
        %v262 = vld [vmem:[%s222] sm:$0x1]
        %v263 = vld [vmem:[%s222 + $0x8] sm:$0x1]
        %v264 = vld [vmem:[%s222 + $0x10] sm:$0x1]
        %v265 = vld [vmem:[%s222 + $0x18] sm:$0x1]
        %v266 = vld [vmem:[%s222 + $0x1] sm:$0x1]
        %v267 = vld [vmem:[%s222 + $0x9] sm:$0x1]
        %v268 = vld [vmem:[%s222 + $0x11] sm:$0x1]
        %v269 = vld [vmem:[%s222 + $0x19] sm:$0x1]
        %v270 = vmax.f32 %v262, %v266
        %v271 = vmax.f32 %v263, %v267
        %v272 = vmax.f32 %v264, %v268
        %v273 = vmax.f32 %v265, %v269
        %v274 = vld [vmem:[%s222 + $0x2] sm:$0x1]
        %v275 = vld [vmem:[%s222 + $0xa] sm:$0x1]
        %v276 = vld [vmem:[%s222 + $0x12] sm:$0x1]
        %v277 = vld [vmem:[%s222 + $0x1a] sm:$0x1]
        %v278 = vmax.f32 %v270, %v274
        %v279 = vmax.f32 %v271, %v275
        %v280 = vmax.f32 %v272, %v276
        %v281 = vmax.f32 %v273, %v277
        %v282 = vld [vmem:[%s222 + $0x3] sm:$0x1]
        %v283 = vld [vmem:[%s222 + $0xb] sm:$0x1]
        %v284 = vld [vmem:[%s222 + $0x13] sm:$0x1]
        %v285 = vld [vmem:[%s222 + $0x1b] sm:$0x1]
        %v286 = vmax.f32 %v278, %v282
        %v287 = vmax.f32 %v279, %v283
        %v288 = vmax.f32 %v280, %v284
        %v289 = vmax.f32 %v281, %v285
        %v290 = vld [vmem:[%s222 + $0x4] sm:$0x1]
        %v291 = vld [vmem:[%s222 + $0xc] sm:$0x1]
        %v292 = vld [vmem:[%s222 + $0x14] sm:$0x1]
        %v293 = vld [vmem:[%s222 + $0x1c] sm:$0x1]
        %v294 = vmax.f32 %v286, %v290
        %v295 = vmax.f32 %v287, %v291
        %v296 = vmax.f32 %v288, %v292
        %v297 = vmax.f32 %v289, %v293
        %v298 = vld [vmem:[%s222 + $0x5] sm:$0x1]
        %v299 = vld [vmem:[%s222 + $0xd] sm:$0x1]
        %v300 = vld [vmem:[%s222 + $0x15] sm:$0x1]
        %v301 = vld [vmem:[%s222 + $0x1d] sm:$0x1]
        %v302 = vmax.f32 %v294, %v298
        %v303 = vmax.f32 %v295, %v299
        %v304 = vmax.f32 %v296, %v300
        %v305 = vmax.f32 %v297, %v301
        %v306 = vld [vmem:[%s222 + $0x6] sm:$0x1]
        %v307 = vld [vmem:[%s222 + $0xe] sm:$0x1]
        %v308 = vld [vmem:[%s222 + $0x16] sm:$0x1]
        %v309 = vld [vmem:[%s222 + $0x1e] sm:$0x1]
        %v310 = vmax.f32 %v302, %v306
        %v311 = vmax.f32 %v303, %v307
        %v312 = vmax.f32 %v304, %v308
        %v313 = vmax.f32 %v305, %v309
        %v314 = vld [vmem:[%s222 + $0x7] sm:$0x1]
        %v315 = vld [vmem:[%s222 + $0xf] sm:$0x1]
        %v316 = vld [vmem:[%s222 + $0x17] sm:$0x1]
        %v317 = vld [vmem:[%s222 + $0x1f] sm:$0x1]
        %v318 = vmax.f32 %v310, %v314
        %v319 = vmax.f32 %v311, %v315
        %v320 = vmax.f32 %v312, %v316
        %v321 = vmax.f32 %v313, %v317
        %v326 = vrot.slane %v318, 4
        %v327 = vrot.slane %v319, 3
        %vm328 = vcmask 1045509
        %v329 = vsel %vm328, %v327, %v326
        %v330 = vrot.slane %v320, 2
        %vm331 = vcmask 1046534
        %v332 = vsel %vm331, %v330, %v329
        %v333 = vrot.slane %v321, 1
        %vm334 = vcmask 1047559
        %v335 = vsel %vm334, %v333, %v332
        %vm337 = vcmask 1043456
        %v338 = vsel %vm337, %v261, %v335
        %v339 = vld [vmem:[%s2] sm:$0xff]
        %v340 = vld [vmem:[%s3] sm:$0xff]
        %342 = vset.pattern.permute.xlu0 0
        %343 = vperm.xlu0 %342, %v340
        %v344 = vpop.permute.xlu0 %343
        %vm346 = vcmask 64512
        %v348 = vsel %vm346, %v339, 0
        %350 = vmatprep.subr.mxu0 0.0
        %351 = vmatpush1.msra.mxu0 %v338
        %352 = vmatprep.subr.mxu0 0.0
        %353 = vmatpush1.msra.mxu0 0.0
        %354 = vmatprep.subr.mxu0 0.0
        %355 = vmatpush1.msra.mxu0 0.0
        %356 = vmatprep.subr.mxu0 0.0
        %357 = vmatpush1.msra.mxu0 0.0
        %358 = vmatprep.subr.mxu0 0.0
        %359 = vmatpush1.msra.mxu0 0.0
        %360 = vmatprep.subr.mxu0 0.0
        %361 = vmatpush1.msra.mxu0 0.0
        %362 = vmatprep.subr.mxu0 0.0
        %363 = vmatpush1.msra.mxu0 0.0
        %364 = vmatprep.subr.mxu0 0.0
        %365 = vmatpush1.msra.mxu0 0.0
        %366 = vmatprep.subr.mxu0 0.0
        %367 = vmatpush1.msra.mxu0 0.0
        %368 = vmatprep.subr.mxu0 0.0
        %369 = vmatpush1.msra.mxu0 0.0
        %370 = vmatprep.subr.mxu0 0.0
        %371 = vmatpush1.msra.mxu0 0.0
        %372 = vmatprep.subr.mxu0 0.0
        %373 = vmatpush1.msra.mxu0 0.0
        %374 = vmatprep.subr.mxu0 0.0
        %375 = vmatpush1.msra.mxu0 0.0
        %376 = vmatprep.subr.mxu0 0.0
        %377 = vmatpush1.msra.mxu0 0.0
        %378 = vmatprep.subr.mxu0 0.0
        %379 = vmatpush1.msra.mxu0 0.0
        %380 = vmatprep.subr.mxu0 0.0
        %381 = vmatpush1.msra.mxu0 0.0
        %382 = vmatprep.subr.mxu0 0.0
        %383 = vmatpush1.msra.mxu0 0.0
        %384 = vmatprep.subr.mxu0 0.0
        %385 = vmatpush1.msra.mxu0 0.0
        %386 = vmatprep.subr.mxu0 0.0
        %387 = vmatpush1.msra.mxu0 0.0
        %388 = vmatprep.subr.mxu0 0.0
        %389 = vmatpush1.msra.mxu0 0.0
        %390 = vmatprep.subr.mxu0 0.0
        %391 = vmatpush1.msra.mxu0 0.0
        %392 = vmatprep.subr.mxu0 0.0
        %393 = vmatpush1.msra.mxu0 0.0
        %394 = vmatprep.subr.mxu0 0.0
        %395 = vmatpush1.msra.mxu0 0.0
        %396 = vmatprep.subr.mxu0 0.0
        %397 = vmatpush1.msra.mxu0 0.0
        %398 = vmatprep.subr.mxu0 0.0
        %399 = vmatpush1.msra.mxu0 0.0
        %400 = vmatprep.subr.mxu0 0.0
        %401 = vmatpush1.msra.mxu0 0.0
        %402 = vmatprep.subr.mxu0 0.0
        %403 = vmatpush1.msra.mxu0 0.0
        %404 = vmatprep.subr.mxu0 0.0
        %405 = vmatpush1.msra.mxu0 0.0
        %406 = vmatprep.subr.mxu0 0.0
        %407 = vmatpush1.msra.mxu0 0.0
        %408 = vmatprep.subr.mxu0 0.0
        %409 = vmatpush1.msra.mxu0 0.0
        %410 = vmatprep.subr.mxu0 0.0
        %411 = vmatpush1.msra.mxu0 0.0
        %412 = vmatprep.subr.mxu0 0.0
        %413 = vmatpush1.msra.mxu0 0.0
        %414 = vmatprep.mubr.f32.mxu0 0.0
        %415 = vmatmul.mubr.f32.gmra.mrb[0].mxu0 %v348
        %v416 = vpop.f32.mrb[0].mxu0
        %v417 = vadd.f32 %v344, %v416
        %v418 = vpop.f32.mrb[0].mxu0
        %419 = vdwg.mxu0
        %v420 = vmax.f32 %v417, 0.0
        %421 = vst [vmem:[%s253] sm:$0xff] %v420
        %s422 = sand.u32 %s141, 1
        %s423 = scalar_lea.sflag [#allocation4], %s422
        %s424 = sand.u32 %s141, 1
        %s425 = smul.addr %s424, 8
        %s426 = scalar_lea.vmem [#allocation5], %s425
        // Predicated region
        $region41: #{tpu_custom_call.1} parent=35 // pred_check
          %p427 = pneg %p151
        $region42: #{tpu_custom_call.1} parent=35 // pred_check_branch
          %429 = sbr.rel (%p427) target = $region44
        $region43: #{tpu_custom_call.1} parent=35 // pred_region
          %s431 = ssub.s32 128, 128
          %432 = vsyncadd %s423, %s431
          %s433 = sadd.s32 %s26, %s25
          %s434 = smul.addr %s433, 128
          %s435 = scalar_lea.hbm %s4, %s434
          %s437 = sshll.u32 %s426, 4
          %s438 = int_to_ptr.vmem [resolvable:$true] %s437
          %440 = dma.vmem_to_hbm [thread:$0]  %s438, 128, %s435, %s423
        $region44: #{tpu_custom_call.1} parent=35 // pred_fallthru
          _
      $region36: #{tpu_custom_call.1} parent=5 // pred_fallthru
        _
      %p441 = scmp.le.s32.totalorder 2, %s16
      // Predicated region
      $region45: #{tpu_custom_call.1} parent=5 // pred_check
        %p442 = pneg %p441
      $region46: #{tpu_custom_call.1} parent=5 // pred_check_branch
        %444 = sbr.rel (%p442) target = $region48
      $region47: #{tpu_custom_call.1} parent=5 // pred_region
        %s445 = ssub.s32 %s16, 2
        // Predicated region
        $region49: #{tpu_custom_call.1} parent=47 // pred_check
          %p446 = pneg %p157
        $region50: #{tpu_custom_call.1} parent=47 // pred_check_branch
          %448 = sbr.rel (%p446) target = $region52
        $region51: #{tpu_custom_call.1} parent=47 // pred_region
          %s449 = sand.u32 %s142, 1
          %s450 = scalar_lea.sflag [#allocation4], %s449
          %s451 = sand.u32 %s142, 1
          %s452 = smul.addr %s451, 8
          %s453 = scalar_lea.vmem [#allocation5], %s452
          %454 = dma.done %s450, 128
        $region52: #{tpu_custom_call.1} parent=47 // pred_fallthru
          _
      $region48: #{tpu_custom_call.1} parent=5 // pred_fallthru
        _
    $region6: #{tpu_custom_call.1} parent=1 // loop_footer
      %s20 = sadd.s32 1, %s16
    $region7: #{tpu_custom_call.1} parent=1 // loop_footer_branch
      %15 = sbr.rel target = $region3
    $region8: #{tpu_custom_call.1} parent=1 // loop_exit
      _
    %455 = vsyncpa [#allocation3], 1
    %s456 = scalar_lea.sflag [#allocation3], 1
    %457 = vsyncpa %s456, 1
    %458 = vsyncpa [#allocation4], 1
    %s459 = scalar_lea.sflag [#allocation4], 1
    %460 = vsyncpa %s459, 1

</llo_original>
